<compile_context>
chip_gen: v6e
topology: v6e:2x2x1
jax: 0.10.0
libtpu: 0.0.40
codegen_flags: <defaults>
</compile_context>

<pallas_src>
import jax
import jax.numpy as jnp
from jax.experimental import pallas as pl
from jax.experimental.pallas import tpu as pltpu


def _round_up(x, m):
    return ((x + m - 1) // m) * m


def _cdiv(a, b):
    return -(-a // b)


def mlp_kernel(x_ref, *refs):
    """refs = (W0, W1, ..., W_{L-1}, bias_slab, out_ref).

    x_ref is the (TB, state_dim+action_dim) batch tile (concat already folded in the wrapper).
    tanh after every layer except the last.  Matmuls run in the weights' storage dtype (bf16
    recommended) with f32 accumulation; bias add + tanh stay in f32 (v5e-safe).
    """
    out_ref = refs[-1]
    b_ref = refs[-2]
    w_refs = refs[:-2]
    n_layers = len(w_refs)

    h = x_ref[...]
    for k, w in enumerate(w_refs):
        dout = w.shape[1]
        h = (jnp.dot(h.astype(w.dtype), w[...], preferred_element_type=jnp.float32)
             + b_ref[k:k + 1, 0:dout])
        if k < n_layers - 1:
            h = jnp.tanh(h)

    out_ref[...] = h.astype(out_ref.dtype)


def state_model_forward(state_input, action_input, params,
                        *, weight_dtype=jnp.bfloat16, block_b=1024):
    """params: list of (W, b) with W shape (Din, Dout), b shape (Dout,).

    Computes tanh(...tanh(concat(flatten(state), flatten(action)) @ W0 + b0)...) @ W_last + b_last,
    i.e. the StateModel forward pass (continuous action space; a discrete (B,) action also works
    since reshape(B, -1) gives (B, 1)).
    """
    B = state_input.shape[0]
    xs = state_input.reshape(B, -1).astype(jnp.float32)
    xa = action_input.reshape(B, -1).astype(jnp.float32)
    x = jnp.concatenate([xs, xa], axis=-1)          # (B, state_dim + action_dim)
    K = x.shape[1]
    out_dim = params[-1][0].shape[1]
    out_pad = _round_up(out_dim, 128)               # lane-dense output block

    # Pad the last layer to a lane-dense output width (zero columns -> zero outputs, sliced off).
    w_last, b_last = params[-1]
    w_last_p = jnp.pad(w_last, ((0, 0), (0, out_pad - out_dim)))
    b_last_p = jnp.pad(b_last, (0, out_pad - out_dim))
    padded_params = list(params[:-1]) + [(w_last_p, b_last_p)]

    weights = [w.astype(weight_dtype) for (w, _) in padded_params]

    # Pack all biases into one (n_layers, max_width) f32 slab (single operand / DMA).
    max_w = max(b.shape[0] for (_, b) in padded_params)
    bias_slab = jnp.stack(
        [jnp.pad(b.astype(jnp.float32), (0, max_w - b.shape[0])) for (_, b) in padded_params])

    # Batch tiling: pad B up to a multiple of 8 (f32 sublane).  For B > 8, pick TB so that the
    # number of tiles is even and >= 2 (keeps both v7x TensorCores busy) while TB <= block_b
    # (large tiles amortize per-step overhead and MXU weight pushes on every chip).
    B8 = _round_up(B, 8)
    if B8 <= 8:
        TB = B8
    else:
        n_pairs = max(1, _cdiv(B8, 2 * block_b))
        TB = _round_up(_cdiv(B8, 2 * n_pairs), 8)
    B_pad = _round_up(B, TB)
    if B_pad != B:
        x = jnp.pad(x, ((0, B_pad - B), (0, 0)))
    num_tiles = B_pad // TB

    # Advisory cost estimate (helps XLA schedule neighbors around this small kernel).
    wdt_bytes = jnp.dtype(weight_dtype).itemsize
    flops = 2 * B_pad * sum(w.shape[0] * w.shape[1] for (w, _) in padded_params)
    transcendentals = B_pad * sum(w.shape[1] for (w, _) in padded_params[:-1])
    bytes_accessed = (
        B_pad * K * 4
        + sum(w.shape[0] * w.shape[1] for (w, _) in padded_params) * wdt_bytes
        + len(padded_params) * max_w * 4
        + B_pad * out_pad * 4)

    def resident(arr):
        # Constant index_map -> block is identical for every grid step -> stays in VMEM.
        nd = arr.ndim
        return pl.BlockSpec(arr.shape, lambda i, _nd=nd: (0,) * _nd)

    in_specs = ([pl.BlockSpec((TB, K), lambda i: (i, 0))]
                + [resident(w) for w in weights]
                + [resident(bias_slab)])
    out_spec = pl.BlockSpec((TB, out_pad), lambda i: (i, 0))

    out = pl.pallas_call(
        mlp_kernel,
        out_shape=jax.ShapeDtypeStruct((B_pad, out_pad), jnp.float32),
        grid=(num_tiles,),
        in_specs=in_specs,
        out_specs=out_spec,
        compiler_params=pltpu.CompilerParams(
            dimension_semantics=("parallel",)),
        cost_estimate=pl.CostEstimate(
            flops=int(flops),
            transcendentals=int(transcendentals),
            bytes_accessed=int(bytes_accessed)),
    )(x, *weights, bias_slab)

    # Drop padded rows (tanh-of-bias garbage) and padded (all-zero) output columns.
    return out[:B, :out_dim]


def init_params(key, state_size, state_memory_size, action_size,
                layers_sizes=(32, 64, 128, 512, 128, 64, 32)):
    """Deterministic synthetic init matching the torch module's layer shapes (W stored (in, out))."""
    dims = [state_size * state_memory_size + action_size] + list(layers_sizes) + [state_size]
    params = []
    for i in range(len(dims) - 1):
        din, dout = dims[i], dims[i + 1]
        key, kw, kb = jax.random.split(key, 3)
        scale = 1.0 / jnp.sqrt(jnp.float32(din))
        w = jax.random.uniform(kw, (din, dout), jnp.float32, -scale, scale)
        b = jax.random.uniform(kb, (dout,), jnp.float32, -scale, scale)
        params.append((w, b))
    return params


def reference_forward_f32(state_input, action_input, params):
    """Pure-f32 reference with the original module's structure (flatten + concat)."""
    B = state_input.shape[0]
    x = jnp.concatenate(
        [state_input.reshape(B, -1), action_input.reshape(B, -1)], axis=-1).astype(jnp.float32)
    n = len(params)
    for i, (w, b) in enumerate(params):
        x = x @ w + b
        if i < n - 1:
            x = jnp.tanh(x)
    return x


def reference_forward_matched(state_input, action_input, params, weight_dtype):
    """Reference mirroring the kernel's dtype strategy (cast to weight_dtype at each dot,
    f32 accumulation, f32 bias/tanh) for a tight numerical comparison."""
    B = state_input.shape[0]
    h = jnp.concatenate(
        [state_input.reshape(B, -1), action_input.reshape(B, -1)], axis=-1).astype(jnp.float32)
    n = len(params)
    for i, (w, b) in enumerate(params):
        h = jnp.dot(h.astype(weight_dtype), w.astype(weight_dtype),
                    preferred_element_type=jnp.float32) + b.astype(jnp.float32)
        if i < n - 1:
            h = jnp.tanh(h)
    return h


if __name__ == "__main__":
    # Small shapes consistent with the module:
    #   state_size=4, state_memory_size=4, action_size=2, batch=2, continuous action space.
    state_size = 4
    state_memory_size = 4
    action_size = 2
    batch = 2

    key = jax.random.PRNGKey(0)
    k_state, k_action, k_params, k_big = jax.random.split(key, 4)

    state_input = jax.random.normal(
        k_state, (batch, state_memory_size, state_size), jnp.float32)
    action_input = jax.random.normal(k_action, (batch, action_size), jnp.float32)
    params = init_params(k_params, state_size, state_memory_size, action_size)

    forward = jax.jit(state_model_forward, static_argnames=("weight_dtype", "block_b"))

    # 1) f32 weights: exactness check against the module-semantics reference.
    out_f32 = jax.block_until_ready(
        forward(state_input, action_input, params, weight_dtype=jnp.float32))
    ref_f32 = reference_forward_f32(state_input, action_input, params)
    assert out_f32.shape == (batch, state_size), out_f32.shape
    assert jnp.allclose(out_f32, ref_f32, atol=1e-4, rtol=1e-4), "f32 mismatch vs reference"

    # 2) bf16 weights (default fast path): tight check vs dtype-matched reference,
    #    loose sanity check vs the f32 module reference.
    out_bf16 = jax.block_until_ready(forward(state_input, action_input, params))
    ref_matched = reference_forward_matched(state_input, action_input, params, jnp.bfloat16)
    assert out_bf16.shape == (batch, state_size), out_bf16.shape
    assert jnp.allclose(out_bf16, ref_matched, atol=1e-3, rtol=1e-3), "bf16 mismatch vs matched ref"
    assert jnp.allclose(out_bf16, ref_f32, atol=5e-2, rtol=5e-2), "bf16 too far from f32 reference"

    # 3) Larger batch exercises the multi-tile path (B=256 -> TB=128, grid=(2,), both v7x TCs).
    big_b = 256
    ks, ka = jax.random.split(k_big)
    big_state = jax.random.normal(ks, (big_b, state_memory_size, state_size), jnp.float32)
    big_action = jax.random.normal(ka, (big_b, action_size), jnp.float32)
    out_big = jax.block_until_ready(forward(big_state, big_action, params))
    ref_big = reference_forward_matched(big_state, big_action, params, jnp.bfloat16)
    assert out_big.shape == (big_b, state_size), out_big.shape
    assert jnp.allclose(out_big, ref_big, atol=1e-3, rtol=1e-3), "batched bf16 mismatch"

    print("KERNEL_OK")
</pallas_src>

<mosaic_0001>
module attributes {stable_mosaic.version = 11 : i64} {
  func.func @mlp_kernel(%arg0: i32, %arg1: memref<8x18xf32, #tpu.memory_space<vmem>>, %arg2: memref<18x32xf32, #tpu.memory_space<vmem>>, %arg3: memref<32x64xf32, #tpu.memory_space<vmem>>, %arg4: memref<64x128xf32, #tpu.memory_space<vmem>>, %arg5: memref<128x512xf32, #tpu.memory_space<vmem>>, %arg6: memref<512x128xf32, #tpu.memory_space<vmem>>, %arg7: memref<128x64xf32, #tpu.memory_space<vmem>>, %arg8: memref<64x32xf32, #tpu.memory_space<vmem>>, %arg9: memref<32x128xf32, #tpu.memory_space<vmem>>, %arg10: memref<8x512xf32, #tpu.memory_space<vmem>>, %arg11: memref<8x128xf32, #tpu.memory_space<vmem>>) attributes {dimension_semantics = [#tpu.dimension_semantics<parallel>], iteration_bounds = array<i64: 1>, scalar_prefetch = 0 : i64, scratch_operands = 0 : i64, tpu.core_type = #tpu.core_type<tc>, window_params = [{transform_indices = @transform_0, window_bounds = array<i64: 8, 18>}, {pipeline_mode = #tpu.pipeline_mode<synchronous>, transform_indices = @transform_1, window_bounds = array<i64: 18, 32>}, {pipeline_mode = #tpu.pipeline_mode<synchronous>, transform_indices = @transform_2, window_bounds = array<i64: 32, 64>}, {pipeline_mode = #tpu.pipeline_mode<synchronous>, transform_indices = @transform_3, window_bounds = array<i64: 64, 128>}, {pipeline_mode = #tpu.pipeline_mode<synchronous>, transform_indices = @transform_4, window_bounds = array<i64: 128, 512>}, {pipeline_mode = #tpu.pipeline_mode<synchronous>, transform_indices = @transform_5, window_bounds = array<i64: 512, 128>}, {pipeline_mode = #tpu.pipeline_mode<synchronous>, transform_indices = @transform_6, window_bounds = array<i64: 128, 64>}, {pipeline_mode = #tpu.pipeline_mode<synchronous>, transform_indices = @transform_7, window_bounds = array<i64: 64, 32>}, {pipeline_mode = #tpu.pipeline_mode<synchronous>, transform_indices = @transform_8, window_bounds = array<i64: 32, 128>}, {pipeline_mode = #tpu.pipeline_mode<synchronous>, transform_indices = @transform_9, window_bounds = array<i64: 8, 512>}, {transform_indices = @transform_10, window_bounds = array<i64: 8, 128>}]} {
    %c0 = arith.constant 0 : index
    %c0_0 = arith.constant 0 : index
    %0 = vector.load %arg1[%c0, %c0_0] : memref<8x18xf32, #tpu.memory_space<vmem>>, vector<8x18xf32>
    %c0_1 = arith.constant 0 : index
    %c0_2 = arith.constant 0 : index
    %1 = vector.load %arg2[%c0_1, %c0_2] : memref<18x32xf32, #tpu.memory_space<vmem>>, vector<18x32xf32>
    %cst = arith.constant dense<0.000000e+00> : vector<8x32xf32>
    %2 = tpu.matmul %0, %1, %cst {dimension_numbers = #tpu.dot_dimension_numbers<[1], [0], [0], [1], [0, 0, 1, 1], [], []>} : vector<8x18xf32>, vector<18x32xf32>, vector<8x32xf32> -> vector<8x32xf32>
    %c0_3 = arith.constant 0 : index
    %c0_4 = arith.constant 0 : index
    %3 = vector.load %arg10[%c0_3, %c0_4] : memref<8x512xf32, #tpu.memory_space<vmem>>, vector<1x32xf32>
    %4 = vector.broadcast %3 : vector<1x32xf32> to vector<8x32xf32>
    %5 = arith.addf %2, %4 : vector<8x32xf32>
    %6 = math.tanh %5 : vector<8x32xf32>
    %c0_5 = arith.constant 0 : index
    %c0_6 = arith.constant 0 : index
    %7 = vector.load %arg3[%c0_5, %c0_6] : memref<32x64xf32, #tpu.memory_space<vmem>>, vector<32x64xf32>
    %cst_7 = arith.constant dense<0.000000e+00> : vector<8x64xf32>
    %8 = tpu.matmul %6, %7, %cst_7 {dimension_numbers = #tpu.dot_dimension_numbers<[1], [0], [0], [1], [0, 0, 1, 1], [], []>} : vector<8x32xf32>, vector<32x64xf32>, vector<8x64xf32> -> vector<8x64xf32>
    %c1 = arith.constant 1 : index
    %c0_8 = arith.constant 0 : index
    %9 = vector.load %arg10[%c1, %c0_8] : memref<8x512xf32, #tpu.memory_space<vmem>>, vector<1x64xf32>
    %10 = vector.broadcast %9 : vector<1x64xf32> to vector<8x64xf32>
    %11 = arith.addf %8, %10 : vector<8x64xf32>
    %12 = math.tanh %11 : vector<8x64xf32>
    %c0_9 = arith.constant 0 : index
    %c0_10 = arith.constant 0 : index
    %13 = vector.load %arg4[%c0_9, %c0_10] : memref<64x128xf32, #tpu.memory_space<vmem>>, vector<64x128xf32>
    %cst_11 = arith.constant dense<0.000000e+00> : vector<8x128xf32>
    %14 = tpu.matmul %12, %13, %cst_11 {dimension_numbers = #tpu.dot_dimension_numbers<[1], [0], [0], [1], [0, 0, 1, 1], [], []>} : vector<8x64xf32>, vector<64x128xf32>, vector<8x128xf32> -> vector<8x128xf32>
    %c2 = arith.constant 2 : index
    %c0_12 = arith.constant 0 : index
    %15 = vector.load %arg10[%c2, %c0_12] : memref<8x512xf32, #tpu.memory_space<vmem>>, vector<1x128xf32>
    %16 = vector.broadcast %15 : vector<1x128xf32> to vector<8x128xf32>
    %17 = arith.addf %14, %16 : vector<8x128xf32>
    %18 = math.tanh %17 : vector<8x128xf32>
    %c0_13 = arith.constant 0 : index
    %c0_14 = arith.constant 0 : index
    %19 = vector.load %arg5[%c0_13, %c0_14] : memref<128x512xf32, #tpu.memory_space<vmem>>, vector<128x512xf32>
    %cst_15 = arith.constant dense<0.000000e+00> : vector<8x512xf32>
    %20 = tpu.matmul %18, %19, %cst_15 {dimension_numbers = #tpu.dot_dimension_numbers<[1], [0], [0], [1], [0, 0, 1, 1], [], []>} : vector<8x128xf32>, vector<128x512xf32>, vector<8x512xf32> -> vector<8x512xf32>
    %c3 = arith.constant 3 : index
    %c0_16 = arith.constant 0 : index
    %21 = vector.load %arg10[%c3, %c0_16] : memref<8x512xf32, #tpu.memory_space<vmem>>, vector<1x512xf32>
    %22 = vector.broadcast %21 : vector<1x512xf32> to vector<8x512xf32>
    %23 = arith.addf %20, %22 : vector<8x512xf32>
    %24 = math.tanh %23 : vector<8x512xf32>
    %c0_17 = arith.constant 0 : index
    %c0_18 = arith.constant 0 : index
    %25 = vector.load %arg6[%c0_17, %c0_18] : memref<512x128xf32, #tpu.memory_space<vmem>>, vector<512x128xf32>
    %cst_19 = arith.constant dense<0.000000e+00> : vector<8x128xf32>
    %26 = tpu.matmul %24, %25, %cst_19 {dimension_numbers = #tpu.dot_dimension_numbers<[1], [0], [0], [1], [0, 0, 1, 1], [], []>} : vector<8x512xf32>, vector<512x128xf32>, vector<8x128xf32> -> vector<8x128xf32>
    %c4 = arith.constant 4 : index
    %c0_20 = arith.constant 0 : index
    %27 = vector.load %arg10[%c4, %c0_20] : memref<8x512xf32, #tpu.memory_space<vmem>>, vector<1x128xf32>
    %28 = vector.broadcast %27 : vector<1x128xf32> to vector<8x128xf32>
    %29 = arith.addf %26, %28 : vector<8x128xf32>
    %30 = math.tanh %29 : vector<8x128xf32>
    %c0_21 = arith.constant 0 : index
    %c0_22 = arith.constant 0 : index
    %31 = vector.load %arg7[%c0_21, %c0_22] : memref<128x64xf32, #tpu.memory_space<vmem>>, vector<128x64xf32>
    %cst_23 = arith.constant dense<0.000000e+00> : vector<8x64xf32>
    %32 = tpu.matmul %30, %31, %cst_23 {dimension_numbers = #tpu.dot_dimension_numbers<[1], [0], [0], [1], [0, 0, 1, 1], [], []>} : vector<8x128xf32>, vector<128x64xf32>, vector<8x64xf32> -> vector<8x64xf32>
    %c5 = arith.constant 5 : index
    %c0_24 = arith.constant 0 : index
    %33 = vector.load %arg10[%c5, %c0_24] : memref<8x512xf32, #tpu.memory_space<vmem>>, vector<1x64xf32>
    %34 = vector.broadcast %33 : vector<1x64xf32> to vector<8x64xf32>
    %35 = arith.addf %32, %34 : vector<8x64xf32>
    %36 = math.tanh %35 : vector<8x64xf32>
    %c0_25 = arith.constant 0 : index
    %c0_26 = arith.constant 0 : index
    %37 = vector.load %arg8[%c0_25, %c0_26] : memref<64x32xf32, #tpu.memory_space<vmem>>, vector<64x32xf32>
    %cst_27 = arith.constant dense<0.000000e+00> : vector<8x32xf32>
    %38 = tpu.matmul %36, %37, %cst_27 {dimension_numbers = #tpu.dot_dimension_numbers<[1], [0], [0], [1], [0, 0, 1, 1], [], []>} : vector<8x64xf32>, vector<64x32xf32>, vector<8x32xf32> -> vector<8x32xf32>
    %c6 = arith.constant 6 : index
    %c0_28 = arith.constant 0 : index
    %39 = vector.load %arg10[%c6, %c0_28] : memref<8x512xf32, #tpu.memory_space<vmem>>, vector<1x32xf32>
    %40 = vector.broadcast %39 : vector<1x32xf32> to vector<8x32xf32>
    %41 = arith.addf %38, %40 : vector<8x32xf32>
    %42 = math.tanh %41 : vector<8x32xf32>
    %c0_29 = arith.constant 0 : index
    %c0_30 = arith.constant 0 : index
    %43 = vector.load %arg9[%c0_29, %c0_30] : memref<32x128xf32, #tpu.memory_space<vmem>>, vector<32x128xf32>
    %cst_31 = arith.constant dense<0.000000e+00> : vector<8x128xf32>
    %44 = tpu.matmul %42, %43, %cst_31 {dimension_numbers = #tpu.dot_dimension_numbers<[1], [0], [0], [1], [0, 0, 1, 1], [], []>} : vector<8x32xf32>, vector<32x128xf32>, vector<8x128xf32> -> vector<8x128xf32>
    %c7 = arith.constant 7 : index
    %c0_32 = arith.constant 0 : index
    %45 = vector.load %arg10[%c7, %c0_32] : memref<8x512xf32, #tpu.memory_space<vmem>>, vector<1x128xf32>
    %46 = vector.broadcast %45 : vector<1x128xf32> to vector<8x128xf32>
    %47 = arith.addf %44, %46 : vector<8x128xf32>
    %c0_33 = arith.constant 0 : index
    %c0_34 = arith.constant 0 : index
    %48 = vector.load %arg11[%c0_33, %c0_34] : memref<8x128xf32, #tpu.memory_space<vmem>>, vector<8x128xf32>
    tpu.vector_store %arg11[%c0_33, %c0_34], %47 {strides = array<i32>} : memref<8x128xf32, #tpu.memory_space<vmem>>, vector<8x128xf32>,
    return
  }
  func.func @transform_0(%arg0: i32) -> (i32, i32) {
    %c0_i32 = arith.constant 0 : i32
    %c0_i32_0 = arith.constant 0 : i32
    return %arg0, %c0_i32 : i32, i32
  }
  func.func @transform_1(%arg0: i32) -> (i32, i32) {
    %c0_i32 = arith.constant 0 : i32
    %c0_i32_0 = arith.constant 0 : i32
    %c0_i32_1 = arith.constant 0 : i32
    return %c0_i32, %c0_i32_0 : i32, i32
  }
  func.func @transform_2(%arg0: i32) -> (i32, i32) {
    %c0_i32 = arith.constant 0 : i32
    %c0_i32_0 = arith.constant 0 : i32
    %c0_i32_1 = arith.constant 0 : i32
    return %c0_i32, %c0_i32_0 : i32, i32
  }
  func.func @transform_3(%arg0: i32) -> (i32, i32) {
    %c0_i32 = arith.constant 0 : i32
    %c0_i32_0 = arith.constant 0 : i32
    %c0_i32_1 = arith.constant 0 : i32
    return %c0_i32, %c0_i32_0 : i32, i32
  }
  func.func @transform_4(%arg0: i32) -> (i32, i32) {
    %c0_i32 = arith.constant 0 : i32
    %c0_i32_0 = arith.constant 0 : i32
    %c0_i32_1 = arith.constant 0 : i32
    return %c0_i32, %c0_i32_0 : i32, i32
  }
  func.func @transform_5(%arg0: i32) -> (i32, i32) {
    %c0_i32 = arith.constant 0 : i32
    %c0_i32_0 = arith.constant 0 : i32
    %c0_i32_1 = arith.constant 0 : i32
    return %c0_i32, %c0_i32_0 : i32, i32
  }
  func.func @transform_6(%arg0: i32) -> (i32, i32) {
    %c0_i32 = arith.constant 0 : i32
    %c0_i32_0 = arith.constant 0 : i32
    %c0_i32_1 = arith.constant 0 : i32
    return %c0_i32, %c0_i32_0 : i32, i32
  }
  func.func @transform_7(%arg0: i32) -> (i32, i32) {
    %c0_i32 = arith.constant 0 : i32
    %c0_i32_0 = arith.constant 0 : i32
    %c0_i32_1 = arith.constant 0 : i32
    return %c0_i32, %c0_i32_0 : i32, i32
  }
  func.func @transform_8(%arg0: i32) -> (i32, i32) {
    %c0_i32 = arith.constant 0 : i32
    %c0_i32_0 = arith.constant 0 : i32
    %c0_i32_1 = arith.constant 0 : i32
    return %c0_i32, %c0_i32_0 : i32, i32
  }
  func.func @transform_9(%arg0: i32) -> (i32, i32) {
    %c0_i32 = arith.constant 0 : i32
    %c0_i32_0 = arith.constant 0 : i32
    %c0_i32_1 = arith.constant 0 : i32
    return %c0_i32, %c0_i32_0 : i32, i32
  }
  func.func @transform_10(%arg0: i32) -> (i32, i32) {
    %c0_i32 = arith.constant 0 : i32
    %c0_i32_0 = arith.constant 0 : i32
    return %arg0, %c0_i32 : i32, i32
  }
}

</mosaic_0001>

<llo_original>
// kernel: state_model_forward.1
$region0: #{state_model_forward.1}
  #allocation0 [shape = 'u32[]', space=smem, size = 0x4, offset = 0x4, fixed_abs, tag = 'smem constant byte address 0x4 - core index']
  #allocation1 [shape = 'u32[144,128]{1,0:T(1,128)}', space=vmem, size = 0x12000, scoped, tag = 'internal scratch']
  %s0 = inlined_call_operand.vmem [shape: f32[8,18], index: 0, kind: input, shape index: {}]
  %s1 = inlined_call_operand.hbm [shape: f32[18,32], index: 1, kind: input, shape index: {}]
  %s2 = inlined_call_operand.hbm [shape: f32[32,64], index: 2, kind: input, shape index: {}]
  %s3 = inlined_call_operand.hbm [shape: f32[64,128], index: 3, kind: input, shape index: {}]
  %s4 = inlined_call_operand.vmem [shape: f32[128,512], index: 4, kind: input, shape index: {}]
  %s5 = inlined_call_operand.hbm [shape: f32[512,128], index: 5, kind: input, shape index: {}]
  %s6 = inlined_call_operand.vmem [shape: f32[128,64], index: 6, kind: input, shape index: {}]
  %s7 = inlined_call_operand.vmem [shape: f32[64,32], index: 7, kind: input, shape index: {}]
  %s8 = inlined_call_operand.vmem [shape: f32[32,128], index: 8, kind: input, shape index: {}]
  %s9 = inlined_call_operand.vmem [shape: f32[8,512], index: 9, kind: input, shape index: {}]
  %s10 = inlined_call_operand.vmem [shape: f32[8,128], index: 10, kind: output, shape index: {}]
  %s11 = sld [smem:[#allocation0]]
  $region66: #{state_model_forward.1} parent=0
    _
  %s13 = ssub.s32 1, %s11
  %s14 = scalar_select 0, %s13, %s11
  $region1: #{state_model_forward.1} parent=0
    #allocation2 [shape = 'u8[12288]{0}', space=vmem, size = 0x3000, scoped, tag = 'input window, operand 1, single buffered']
    #allocation3 [shape = 's32[1]{0}', space=sflag, size = 0x4, scoped, tag = 'scoped memory for state_model_forward.1']
    #allocation4 [shape = 'u8[16384]{0}', space=vmem, size = 0x4000, scoped, tag = 'input window, operand 2, single buffered']
    #allocation5 [shape = 's32[1]{0}', space=sflag, size = 0x4, scoped, tag = 'scoped memory for state_model_forward.1']
    #allocation6 [shape = 'u8[32768]{0}', space=vmem, size = 0x8000, scoped, tag = 'input window, operand 3, single buffered']
    #allocation7 [shape = 'u8[262144]{0}', space=vmem, size = 0x40000, scoped, tag = 'input window, operand 5, single buffered']
    #allocation8 [shape = 's32[1]{0}', space=sflag, size = 0x4, scoped, tag = 'scoped memory for state_model_forward.1']
    %15 = vsyncpa [#allocation3], 0
    %16 = vsyncpa [#allocation5], 0
    %17 = vsyncpa [#allocation8], 0
    // Predicated region
    $region2: #{state_model_forward.1} parent=1 // pred_check
      _
    $region3: #{state_model_forward.1} parent=1 // pred_check_branch
      %19 = sbr.rel (0) target = $region5
    $region4: #{state_model_forward.1} parent=1 // pred_region
      _
    $region5: #{state_model_forward.1} parent=1 // pred_fallthru
      _
    // Predicated region
    $region6: #{state_model_forward.1} parent=1 // pred_check
      _
    $region7: #{state_model_forward.1} parent=1 // pred_check_branch
      %21 = sbr.rel (0) target = $region9
    $region8: #{state_model_forward.1} parent=1 // pred_region
      %s23 = ssub.s32 384, 384
      %24 = vsyncadd [#allocation3], %s23
      %s25 = sshll.u32 [#allocation2], 4
      %s26 = int_to_ptr.vmem [resolvable:$true] %s25
      %31 = dma.hbm_to_vmem [thread:$0]  %s1, 384, %s26, [#allocation3], 128, 128, 8
    $region9: #{state_model_forward.1} parent=1 // pred_fallthru
      _
    // Predicated region
    $region10: #{state_model_forward.1} parent=1 // pred_check
      _
    $region11: #{state_model_forward.1} parent=1 // pred_check_branch
      %33 = sbr.rel (0) target = $region13
    $region12: #{state_model_forward.1} parent=1 // pred_region
      %s35 = ssub.s32 512, 512
      %36 = vsyncadd [#allocation5], %s35
      %s37 = sshll.u32 [#allocation4], 4
      %s38 = int_to_ptr.vmem [resolvable:$true] %s37
      %43 = dma.hbm_to_vmem [thread:$0]  %s2, 512, %s38, [#allocation5], 128, 128, 8
    $region13: #{state_model_forward.1} parent=1 // pred_fallthru
      _
    // Predicated region
    $region14: #{state_model_forward.1} parent=1 // pred_check
      _
    $region15: #{state_model_forward.1} parent=1 // pred_check_branch
      %45 = sbr.rel (0) target = $region17
    $region16: #{state_model_forward.1} parent=1 // pred_region
      %s47 = ssub.s32 1024, 1024
      %48 = vsyncadd [#allocation5], %s47
      %s49 = sshll.u32 [#allocation6], 4
      %s50 = int_to_ptr.vmem [resolvable:$true] %s49
      %55 = dma.hbm_to_vmem [thread:$0]  %s3, 1024, %s50, [#allocation5], 128, 128, 8
    $region17: #{state_model_forward.1} parent=1 // pred_fallthru
      _
    // Predicated region
    $region18: #{state_model_forward.1} parent=1 // pred_check
      _
    $region19: #{state_model_forward.1} parent=1 // pred_check_branch
      %57 = sbr.rel (0) target = $region21
    $region20: #{state_model_forward.1} parent=1 // pred_region
      _
    $region21: #{state_model_forward.1} parent=1 // pred_fallthru
      _
    // Predicated region
    $region22: #{state_model_forward.1} parent=1 // pred_check
      _
    $region23: #{state_model_forward.1} parent=1 // pred_check_branch
      %59 = sbr.rel (0) target = $region25
    $region24: #{state_model_forward.1} parent=1 // pred_region
      %s61 = ssub.s32 8192, 8192
      %62 = vsyncadd [#allocation8], %s61
      %s63 = sshll.u32 [#allocation7], 4
      %s64 = int_to_ptr.vmem [resolvable:$true] %s63
      %69 = dma.hbm_to_vmem [thread:$0]  %s5, 8192, %s64, [#allocation8], 128, 128, 8
    $region25: #{state_model_forward.1} parent=1 // pred_fallthru
      _
    // Predicated region
    $region26: #{state_model_forward.1} parent=1 // pred_check
      _
    $region27: #{state_model_forward.1} parent=1 // pred_check_branch
      %71 = sbr.rel (0) target = $region29
    $region28: #{state_model_forward.1} parent=1 // pred_region
      _
    $region29: #{state_model_forward.1} parent=1 // pred_fallthru
      _
    // Predicated region
    $region30: #{state_model_forward.1} parent=1 // pred_check
      _
    $region31: #{state_model_forward.1} parent=1 // pred_check_branch
      %73 = sbr.rel (0) target = $region33
    $region32: #{state_model_forward.1} parent=1 // pred_region
      _
    $region33: #{state_model_forward.1} parent=1 // pred_fallthru
      _
    // Predicated region
    $region34: #{state_model_forward.1} parent=1 // pred_check
      _
    $region35: #{state_model_forward.1} parent=1 // pred_check_branch
      %75 = sbr.rel (0) target = $region37
    $region36: #{state_model_forward.1} parent=1 // pred_region
      _
    $region37: #{state_model_forward.1} parent=1 // pred_fallthru
      _
    // Predicated region
    $region38: #{state_model_forward.1} parent=1 // pred_check
      _
    $region39: #{state_model_forward.1} parent=1 // pred_check_branch
      %77 = sbr.rel (0) target = $region41
    $region40: #{state_model_forward.1} parent=1 // pred_region
      _
    $region41: #{state_model_forward.1} parent=1 // pred_fallthru
      _
    // Predicated region
    $region42: #{state_model_forward.1} parent=1 // pred_check
      _
    $region43: #{state_model_forward.1} parent=1 // pred_check_branch
      %79 = sbr.rel (0) target = $region45
    $region44: #{state_model_forward.1} parent=1 // pred_region
      %80 = dma.done [#allocation3], 384
    $region45: #{state_model_forward.1} parent=1 // pred_fallthru
      _
    // Predicated region
    $region46: #{state_model_forward.1} parent=1 // pred_check
      _
    $region47: #{state_model_forward.1} parent=1 // pred_check_branch
      %82 = sbr.rel (0) target = $region49
    $region48: #{state_model_forward.1} parent=1 // pred_region
      %83 = dma.done [#allocation5], 512
    $region49: #{state_model_forward.1} parent=1 // pred_fallthru
      _
    // Predicated region
    $region50: #{state_model_forward.1} parent=1 // pred_check
      _
    $region51: #{state_model_forward.1} parent=1 // pred_check_branch
      %85 = sbr.rel (0) target = $region53
    $region52: #{state_model_forward.1} parent=1 // pred_region
      %86 = dma.done [#allocation5], 1024
    $region53: #{state_model_forward.1} parent=1 // pred_fallthru
      _
    // Predicated region
    $region54: #{state_model_forward.1} parent=1 // pred_check
      _
    $region55: #{state_model_forward.1} parent=1 // pred_check_branch
      %88 = sbr.rel (0) target = $region57
    $region56: #{state_model_forward.1} parent=1 // pred_region
      %89 = dma.done [#allocation8], 8192
    $region57: #{state_model_forward.1} parent=1 // pred_fallthru
      _
    %v90 = vld [vmem:[%s0] sm:$0xff]
    %v91 = vld [vmem:[#allocation2] sm:$0xff]
    %v92 = vld [vmem:[#allocation2 + $0x8] sm:$0xff]
    %v93 = vld [vmem:[#allocation2 + $0x10] sm:$0x3]
    %v94 = vld [vmem:[%s9] ss:$0 sm:$0xff]
    %vm95 = vcmask 146432
    %v97 = vsel %vm95, %v90, 0
    %vm99 = vcmask 1041408
    %v101 = vsel %vm99, %v93, 0
    %103 = vmatprep.subr.mxu0 0.0
    %104 = vmatpush1.msra.mxu0 0.0
    %105 = vmatprep.subr.mxu0 0.0
    %106 = vmatpush1.msra.mxu0 0.0
    %107 = vmatprep.subr.mxu0 0.0
    %108 = vmatpush1.msra.mxu0 0.0
    %109 = vmatprep.subr.mxu0 0.0
    %110 = vmatpush1.msra.mxu0 0.0
    %111 = vmatprep.subr.mxu0 0.0
    %112 = vmatpush1.msra.mxu0 0.0
    %113 = vmatprep.subr.mxu0 0.0
    %114 = vmatpush1.msra.mxu0 0.0
    %115 = vmatprep.subr.mxu0 0.0
    %116 = vmatpush1.msra.mxu0 0.0
    %117 = vmatprep.subr.mxu0 0.0
    %118 = vmatpush1.msra.mxu0 0.0
    %119 = vmatprep.subr.mxu0 0.0
    %120 = vmatpush1.msra.mxu0 0.0
    %121 = vmatprep.subr.mxu0 0.0
    %122 = vmatpush1.msra.mxu0 0.0
    %123 = vmatprep.subr.mxu0 0.0
    %124 = vmatpush1.msra.mxu0 0.0
    %125 = vmatprep.subr.mxu0 0.0
    %126 = vmatpush1.msra.mxu0 0.0
    %127 = vmatprep.subr.mxu0 0.0
    %128 = vmatpush1.msra.mxu0 0.0
    %129 = vmatprep.subr.mxu0 0.0
    %130 = vmatpush1.msra.mxu0 %v101
    %131 = vmatprep.subr.mxu0 0.0
    %132 = vmatpush1.msra.mxu0 %v92
    %133 = vmatprep.subr.mxu0 0.0
    %134 = vmatpush1.msra.mxu0 %v91
    %135 = vmatprep.subr.mxu0 0.0
    %136 = vmatpush2.msra.mxu0 0.0
    %137 = vmatprep.subr.mxu0 0.0
    %138 = vmatpush2.msra.mxu0 0.0
    %139 = vmatprep.subr.mxu0 0.0
    %140 = vmatpush2.msra.mxu0 0.0
    %141 = vmatprep.subr.mxu0 0.0
    %142 = vmatpush2.msra.mxu0 0.0
    %143 = vmatprep.subr.mxu0 0.0
    %144 = vmatpush2.msra.mxu0 0.0
    %145 = vmatprep.subr.mxu0 0.0
    %146 = vmatpush2.msra.mxu0 0.0
    %147 = vmatprep.subr.mxu0 0.0
    %148 = vmatpush2.msra.mxu0 0.0
    %149 = vmatprep.subr.mxu0 0.0
    %150 = vmatpush2.msra.mxu0 0.0
    %151 = vmatprep.subr.mxu0 0.0
    %152 = vmatpush2.msra.mxu0 0.0
    %153 = vmatprep.subr.mxu0 0.0
    %154 = vmatpush2.msra.mxu0 0.0
    %155 = vmatprep.subr.mxu0 0.0
    %156 = vmatpush2.msra.mxu0 0.0
    %157 = vmatprep.subr.mxu0 0.0
    %158 = vmatpush2.msra.mxu0 0.0
    %159 = vmatprep.subr.mxu0 0.0
    %160 = vmatpush2.msra.mxu0 0.0
    %161 = vmatprep.subr.mxu0 0.0
    %162 = vmatpush2.msra.mxu0 0.0
    %163 = vmatprep.subr.mxu0 0.0
    %164 = vmatpush2.msra.mxu0 0.0
    %165 = vmatprep.subr.mxu0 0.0
    %166 = vmatpush2.msra.mxu0 0.0
    %167 = vmatprep.mubr.f32.mxu0 0.0
    %168 = vmatmul.mubr.f32.gmra.mxu0 %v97
    %v169 = vpop.f32.mrf.mxu0
    %v170 = vadd.f32 %v94, %v169
    %v171 = vpop.f32.mrf.mxu0
    %172 = vdwg.mxu0
    %v173 = vtanh.pop %v170
    %v174 = vld [vmem:[#allocation4] sm:$0xff]
    %v175 = vld [vmem:[#allocation4 + $0x8] sm:$0xff]
    %v176 = vld [vmem:[#allocation4 + $0x10] sm:$0xff]
    %v177 = vld [vmem:[#allocation4 + $0x18] sm:$0xff]
    %v178 = vld [vmem:[%s9 + $0x1] ss:$0 sm:$0xff]
    %vm179 = vcmask 261120
    %v181 = vsel %vm179, %v173, 0
    %183 = vmatprep.subr.mxu0 0.0
    %184 = vmatpush1.msra.mxu0 0.0
    %185 = vmatprep.subr.mxu0 0.0
    %186 = vmatpush1.msra.mxu0 0.0
    %187 = vmatprep.subr.mxu0 0.0
    %188 = vmatpush1.msra.mxu0 0.0
    %189 = vmatprep.subr.mxu0 0.0
    %190 = vmatpush1.msra.mxu0 0.0
    %191 = vmatprep.subr.mxu0 0.0
    %192 = vmatpush1.msra.mxu0 0.0
    %193 = vmatprep.subr.mxu0 0.0
    %194 = vmatpush1.msra.mxu0 0.0
    %195 = vmatprep.subr.mxu0 0.0
    %196 = vmatpush1.msra.mxu0 0.0
    %197 = vmatprep.subr.mxu0 0.0
    %198 = vmatpush1.msra.mxu0 0.0
    %199 = vmatprep.subr.mxu0 0.0
    %200 = vmatpush1.msra.mxu0 0.0
    %201 = vmatprep.subr.mxu0 0.0
    %202 = vmatpush1.msra.mxu0 0.0
    %203 = vmatprep.subr.mxu0 0.0
    %204 = vmatpush1.msra.mxu0 0.0
    %205 = vmatprep.subr.mxu0 0.0
    %206 = vmatpush1.msra.mxu0 0.0
    %207 = vmatprep.subr.mxu0 0.0
    %208 = vmatpush1.msra.mxu0 %v177
    %209 = vmatprep.subr.mxu0 0.0
    %210 = vmatpush1.msra.mxu0 %v176
    %211 = vmatprep.subr.mxu0 0.0
    %212 = vmatpush1.msra.mxu0 %v175
    %213 = vmatprep.subr.mxu0 0.0
    %214 = vmatpush1.msra.mxu0 %v174
    %215 = vmatprep.subr.mxu0 0.0
    %216 = vmatpush2.msra.mxu0 0.0
    %217 = vmatprep.subr.mxu0 0.0
    %218 = vmatpush2.msra.mxu0 0.0
    %219 = vmatprep.subr.mxu0 0.0
    %220 = vmatpush2.msra.mxu0 0.0
    %221 = vmatprep.subr.mxu0 0.0
    %222 = vmatpush2.msra.mxu0 0.0
    %223 = vmatprep.subr.mxu0 0.0
    %224 = vmatpush2.msra.mxu0 0.0
    %225 = vmatprep.subr.mxu0 0.0
    %226 = vmatpush2.msra.mxu0 0.0
    %227 = vmatprep.subr.mxu0 0.0
    %228 = vmatpush2.msra.mxu0 0.0
    %229 = vmatprep.subr.mxu0 0.0
    %230 = vmatpush2.msra.mxu0 0.0
    %231 = vmatprep.subr.mxu0 0.0
    %232 = vmatpush2.msra.mxu0 0.0
    %233 = vmatprep.subr.mxu0 0.0
    %234 = vmatpush2.msra.mxu0 0.0
    %235 = vmatprep.subr.mxu0 0.0
    %236 = vmatpush2.msra.mxu0 0.0
    %237 = vmatprep.subr.mxu0 0.0
    %238 = vmatpush2.msra.mxu0 0.0
    %239 = vmatprep.subr.mxu0 0.0
    %240 = vmatpush2.msra.mxu0 0.0
    %241 = vmatprep.subr.mxu0 0.0
    %242 = vmatpush2.msra.mxu0 0.0
    %243 = vmatprep.subr.mxu0 0.0
    %244 = vmatpush2.msra.mxu0 0.0
    %245 = vmatprep.subr.mxu0 0.0
    %246 = vmatpush2.msra.mxu0 0.0
    %247 = vmatprep.mubr.f32.mxu0 0.0
    %248 = vmatmul.mubr.f32.gmra.mxu0 %v181
    %v249 = vpop.f32.mrf.mxu0
    %v250 = vadd.f32 %v178, %v249
    %v251 = vpop.f32.mrf.mxu0
    %252 = vdwg.mxu0
    %v253 = vtanh.pop %v250
    %v254 = vld [vmem:[#allocation6] sm:$0xff]
    %v255 = vld [vmem:[#allocation6 + $0x8] sm:$0xff]
    %v256 = vld [vmem:[#allocation6 + $0x10] sm:$0xff]
    %v257 = vld [vmem:[#allocation6 + $0x18] sm:$0xff]
    %v258 = vld [vmem:[#allocation6 + $0x20] sm:$0xff]
    %v259 = vld [vmem:[#allocation6 + $0x28] sm:$0xff]
    %v260 = vld [vmem:[#allocation6 + $0x30] sm:$0xff]
    %v261 = vld [vmem:[#allocation6 + $0x38] sm:$0xff]
    %v262 = vld [vmem:[%s9 + $0x2] ss:$0 sm:$0xff]
    %vm263 = vcmask 523264
    %v265 = vsel %vm263, %v253, 0
    %267 = vmatprep.subr.mxu0 0.0
    %268 = vmatpush1.msra.mxu0 0.0
    %269 = vmatprep.subr.mxu0 0.0
    %270 = vmatpush1.msra.mxu0 0.0
    %271 = vmatprep.subr.mxu0 0.0
    %272 = vmatpush1.msra.mxu0 0.0
    %273 = vmatprep.subr.mxu0 0.0
    %274 = vmatpush1.msra.mxu0 0.0
    %275 = vmatprep.subr.mxu0 0.0
    %276 = vmatpush1.msra.mxu0 0.0
    %277 = vmatprep.subr.mxu0 0.0
    %278 = vmatpush1.msra.mxu0 0.0
    %279 = vmatprep.subr.mxu0 0.0
    %280 = vmatpush1.msra.mxu0 0.0
    %281 = vmatprep.subr.mxu0 0.0
    %282 = vmatpush1.msra.mxu0 0.0
    %283 = vmatprep.subr.mxu0 0.0
    %284 = vmatpush1.msra.mxu0 %v261
    %285 = vmatprep.subr.mxu0 0.0
    %286 = vmatpush1.msra.mxu0 %v260
    %287 = vmatprep.subr.mxu0 0.0
    %288 = vmatpush1.msra.mxu0 %v259
    %289 = vmatprep.subr.mxu0 0.0
    %290 = vmatpush1.msra.mxu0 %v258
    %291 = vmatprep.subr.mxu0 0.0
    %292 = vmatpush1.msra.mxu0 %v257
    %293 = vmatprep.subr.mxu0 0.0
    %294 = vmatpush1.msra.mxu0 %v256
    %295 = vmatprep.subr.mxu0 0.0
    %296 = vmatpush1.msra.mxu0 %v255
    %297 = vmatprep.subr.mxu0 0.0
    %298 = vmatpush1.msra.mxu0 %v254
    %299 = vmatprep.subr.mxu0 0.0
    %300 = vmatpush2.msra.mxu0 0.0
    %301 = vmatprep.subr.mxu0 0.0
    %302 = vmatpush2.msra.mxu0 0.0
    %303 = vmatprep.subr.mxu0 0.0
    %304 = vmatpush2.msra.mxu0 0.0
    %305 = vmatprep.subr.mxu0 0.0
    %306 = vmatpush2.msra.mxu0 0.0
    %307 = vmatprep.subr.mxu0 0.0
    %308 = vmatpush2.msra.mxu0 0.0
    %309 = vmatprep.subr.mxu0 0.0
    %310 = vmatpush2.msra.mxu0 0.0
    %311 = vmatprep.subr.mxu0 0.0
    %312 = vmatpush2.msra.mxu0 0.0
    %313 = vmatprep.subr.mxu0 0.0
    %314 = vmatpush2.msra.mxu0 0.0
    %315 = vmatprep.subr.mxu0 0.0
    %316 = vmatpush2.msra.mxu0 0.0
    %317 = vmatprep.subr.mxu0 0.0
    %318 = vmatpush2.msra.mxu0 0.0
    %319 = vmatprep.subr.mxu0 0.0
    %320 = vmatpush2.msra.mxu0 0.0
    %321 = vmatprep.subr.mxu0 0.0
    %322 = vmatpush2.msra.mxu0 0.0
    %323 = vmatprep.subr.mxu0 0.0
    %324 = vmatpush2.msra.mxu0 0.0
    %325 = vmatprep.subr.mxu0 0.0
    %326 = vmatpush2.msra.mxu0 0.0
    %327 = vmatprep.subr.mxu0 0.0
    %328 = vmatpush2.msra.mxu0 0.0
    %329 = vmatprep.subr.mxu0 0.0
    %330 = vmatpush2.msra.mxu0 0.0
    %331 = vmatprep.mubr.f32.mxu0 0.0
    %332 = vmatmul.mubr.f32.gmra.mxu0 %v265
    %v333 = vpop.f32.mrf.mxu0
    %v334 = vadd.f32 %v262, %v333
    %v335 = vpop.f32.mrf.mxu0
    %336 = vdwg.mxu0
    %v337 = vtanh.pop %v334
    %v338 = vld [vmem:[%s4] sm:$0xff]
    %v339 = vld [vmem:[%s4 + $0x8] sm:$0xff]
    %v340 = vld [vmem:[%s4 + $0x10] sm:$0xff]
    %v341 = vld [vmem:[%s4 + $0x18] sm:$0xff]
    %v342 = vld [vmem:[%s4 + $0x20] sm:$0xff]
    %v343 = vld [vmem:[%s4 + $0x28] sm:$0xff]
    %v344 = vld [vmem:[%s4 + $0x30] sm:$0xff]
    %v345 = vld [vmem:[%s4 + $0x38] sm:$0xff]
    %v346 = vld [vmem:[%s4 + $0x40] sm:$0xff]
    %v347 = vld [vmem:[%s4 + $0x48] sm:$0xff]
    %v348 = vld [vmem:[%s4 + $0x50] sm:$0xff]
    %v349 = vld [vmem:[%s4 + $0x58] sm:$0xff]
    %v350 = vld [vmem:[%s4 + $0x60] sm:$0xff]
    %v351 = vld [vmem:[%s4 + $0x68] sm:$0xff]
    %v352 = vld [vmem:[%s4 + $0x70] sm:$0xff]
    %v353 = vld [vmem:[%s4 + $0x78] sm:$0xff]
    %v354 = vld [vmem:[%s4 + $0x80] sm:$0xff]
    %v355 = vld [vmem:[%s4 + $0x88] sm:$0xff]
    %v356 = vld [vmem:[%s4 + $0x90] sm:$0xff]
    %v357 = vld [vmem:[%s4 + $0x98] sm:$0xff]
    %v358 = vld [vmem:[%s4 + $0xa0] sm:$0xff]
    %v359 = vld [vmem:[%s4 + $0xa8] sm:$0xff]
    %v360 = vld [vmem:[%s4 + $0xb0] sm:$0xff]
    %v361 = vld [vmem:[%s4 + $0xb8] sm:$0xff]
    %v362 = vld [vmem:[%s4 + $0xc0] sm:$0xff]
    %v363 = vld [vmem:[%s4 + $0xc8] sm:$0xff]
    %v364 = vld [vmem:[%s4 + $0xd0] sm:$0xff]
    %v365 = vld [vmem:[%s4 + $0xd8] sm:$0xff]
    %v366 = vld [vmem:[%s4 + $0xe0] sm:$0xff]
    %v367 = vld [vmem:[%s4 + $0xe8] sm:$0xff]
    %v368 = vld [vmem:[%s4 + $0xf0] sm:$0xff]
    %v369 = vld [vmem:[%s4 + $0xf8] sm:$0xff]
    %v370 = vld [vmem:[%s4 + $0x100] sm:$0xff]
    %v371 = vld [vmem:[%s4 + $0x108] sm:$0xff]
    %v372 = vld [vmem:[%s4 + $0x110] sm:$0xff]
    %v373 = vld [vmem:[%s4 + $0x118] sm:$0xff]
    %v374 = vld [vmem:[%s4 + $0x120] sm:$0xff]
    %v375 = vld [vmem:[%s4 + $0x128] sm:$0xff]
    %v376 = vld [vmem:[%s4 + $0x130] sm:$0xff]
    %v377 = vld [vmem:[%s4 + $0x138] sm:$0xff]
    %v378 = vld [vmem:[%s4 + $0x140] sm:$0xff]
    %v379 = vld [vmem:[%s4 + $0x148] sm:$0xff]
    %v380 = vld [vmem:[%s4 + $0x150] sm:$0xff]
    %v381 = vld [vmem:[%s4 + $0x158] sm:$0xff]
    %v382 = vld [vmem:[%s4 + $0x160] sm:$0xff]
    %v383 = vld [vmem:[%s4 + $0x168] sm:$0xff]
    %v384 = vld [vmem:[%s4 + $0x170] sm:$0xff]
    %v385 = vld [vmem:[%s4 + $0x178] sm:$0xff]
    %v386 = vld [vmem:[%s4 + $0x180] sm:$0xff]
    %v387 = vld [vmem:[%s4 + $0x188] sm:$0xff]
    %v388 = vld [vmem:[%s4 + $0x190] sm:$0xff]
    %v389 = vld [vmem:[%s4 + $0x198] sm:$0xff]
    %v390 = vld [vmem:[%s4 + $0x1a0] sm:$0xff]
    %v391 = vld [vmem:[%s4 + $0x1a8] sm:$0xff]
    %v392 = vld [vmem:[%s4 + $0x1b0] sm:$0xff]
    %v393 = vld [vmem:[%s4 + $0x1b8] sm:$0xff]
    %v394 = vld [vmem:[%s4 + $0x1c0] sm:$0xff]
    %v395 = vld [vmem:[%s4 + $0x1c8] sm:$0xff]
    %v396 = vld [vmem:[%s4 + $0x1d0] sm:$0xff]
    %v397 = vld [vmem:[%s4 + $0x1d8] sm:$0xff]
    %v398 = vld [vmem:[%s4 + $0x1e0] sm:$0xff]
    %v399 = vld [vmem:[%s4 + $0x1e8] sm:$0xff]
    %v400 = vld [vmem:[%s4 + $0x1f0] sm:$0xff]
    %v401 = vld [vmem:[%s4 + $0x1f8] sm:$0xff]
    %s402 = scalar_lea.vmem %s9, 3
    %v403 = vld [vmem:[%s402] ss:$8 sm:$0xf]
    %v405 = vlaneseq
    %v406 = vshrl.u32 %v405, 7
    %v407 = vsub.s32 0, %v406
    %v408 = vrot.slane %v403, %v407
    %v409 = vlaneseq
    %v410 = vshrl.u32 %v409, 7
    %v411 = vsub.s32 1, %v410
    %v412 = vrot.slane %v403, %v411
    %v413 = vlaneseq
    %v414 = vshrl.u32 %v413, 7
    %v415 = vsub.s32 2, %v414
    %v416 = vrot.slane %v403, %v415
    %v417 = vlaneseq
    %v418 = vshrl.u32 %v417, 7
    %v419 = vsub.s32 3, %v418
    %v420 = vrot.slane %v403, %v419
    %425 = vmatprep.subr.mxu0 %v399
    %426 = vmatpush1.msra.mxu0 %v398
    %427 = vmatprep.subr.mxu0 %v395
    %428 = vmatpush1.msra.mxu0 %v394
    %429 = vmatprep.subr.mxu0 %v391
    %430 = vmatpush1.msra.mxu0 %v390
    %431 = vmatprep.subr.mxu0 %v387
    %432 = vmatpush1.msra.mxu0 %v386
    %433 = vmatprep.subr.mxu0 %v383
    %434 = vmatpush1.msra.mxu0 %v382
    %435 = vmatprep.subr.mxu0 %v379
    %436 = vmatpush1.msra.mxu0 %v378
    %437 = vmatprep.subr.mxu0 %v375
    %438 = vmatpush1.msra.mxu0 %v374
    %439 = vmatprep.subr.mxu0 %v371
    %440 = vmatpush1.msra.mxu0 %v370
    %441 = vmatprep.subr.mxu0 %v367
    %442 = vmatpush1.msra.mxu0 %v366
    %443 = vmatprep.subr.mxu0 %v363
    %444 = vmatpush1.msra.mxu0 %v362
    %445 = vmatprep.subr.mxu0 %v359
    %446 = vmatpush1.msra.mxu0 %v358
    %447 = vmatprep.subr.mxu0 %v355
    %448 = vmatpush1.msra.mxu0 %v354
    %449 = vmatprep.subr.mxu0 %v351
    %450 = vmatpush1.msra.mxu0 %v350
    %451 = vmatprep.subr.mxu0 %v347
    %452 = vmatpush1.msra.mxu0 %v346
    %453 = vmatprep.subr.mxu0 %v343
    %454 = vmatpush1.msra.mxu0 %v342
    %455 = vmatprep.subr.mxu0 %v339
    %456 = vmatpush1.msra.mxu0 %v338
    %457 = vmatprep.subr.mxu0 0.0
    %458 = vmatpush2.msra.mxu0 0.0
    %459 = vmatprep.subr.mxu0 0.0
    %460 = vmatpush2.msra.mxu0 0.0
    %461 = vmatprep.subr.mxu0 0.0
    %462 = vmatpush2.msra.mxu0 0.0
    %463 = vmatprep.subr.mxu0 0.0
    %464 = vmatpush2.msra.mxu0 0.0
    %465 = vmatprep.subr.mxu0 0.0
    %466 = vmatpush2.msra.mxu0 0.0
    %467 = vmatprep.subr.mxu0 0.0
    %468 = vmatpush2.msra.mxu0 0.0
    %469 = vmatprep.subr.mxu0 0.0
    %470 = vmatpush2.msra.mxu0 0.0
    %471 = vmatprep.subr.mxu0 0.0
    %472 = vmatpush2.msra.mxu0 0.0
    %473 = vmatprep.subr.mxu0 0.0
    %474 = vmatpush2.msra.mxu0 0.0
    %475 = vmatprep.subr.mxu0 0.0
    %476 = vmatpush2.msra.mxu0 0.0
    %477 = vmatprep.subr.mxu0 0.0
    %478 = vmatpush2.msra.mxu0 0.0
    %479 = vmatprep.subr.mxu0 0.0
    %480 = vmatpush2.msra.mxu0 0.0
    %481 = vmatprep.subr.mxu0 0.0
    %482 = vmatpush2.msra.mxu0 0.0
    %483 = vmatprep.subr.mxu0 0.0
    %484 = vmatpush2.msra.mxu0 0.0
    %485 = vmatprep.subr.mxu0 0.0
    %486 = vmatpush2.msra.mxu0 0.0
    %487 = vmatprep.subr.mxu0 0.0
    %488 = vmatpush2.msra.mxu0 0.0
    %489 = vmatprep.mubr.f32.mxu0 0.0
    %490 = vmatmul.mubr.f32.gmra.mxu0 %v337
    %v491 = vpop.f32.mrf.mxu0
    %v492 = vadd.f32 %v408, %v491
    %v493 = vpop.f32.mrf.mxu0
    %v494 = vadd.f32 %v412, %v493
    %495 = vdwg.mxu0
    %496 = vmatprep.subr.mxu0 %v401
    %497 = vmatpush1.msra.mxu0 %v400
    %498 = vmatprep.subr.mxu0 %v397
    %499 = vmatpush1.msra.mxu0 %v396
    %500 = vmatprep.subr.mxu0 %v393
    %501 = vmatpush1.msra.mxu0 %v392
    %502 = vmatprep.subr.mxu0 %v389
    %503 = vmatpush1.msra.mxu0 %v388
    %504 = vmatprep.subr.mxu0 %v385
    %505 = vmatpush1.msra.mxu0 %v384
    %506 = vmatprep.subr.mxu0 %v381
    %507 = vmatpush1.msra.mxu0 %v380
    %508 = vmatprep.subr.mxu0 %v377
    %509 = vmatpush1.msra.mxu0 %v376
    %510 = vmatprep.subr.mxu0 %v373
    %511 = vmatpush1.msra.mxu0 %v372
    %512 = vmatprep.subr.mxu0 %v369
    %513 = vmatpush1.msra.mxu0 %v368
    %514 = vmatprep.subr.mxu0 %v365
    %515 = vmatpush1.msra.mxu0 %v364
    %516 = vmatprep.subr.mxu0 %v361
    %517 = vmatpush1.msra.mxu0 %v360
    %518 = vmatprep.subr.mxu0 %v357
    %519 = vmatpush1.msra.mxu0 %v356
    %520 = vmatprep.subr.mxu0 %v353
    %521 = vmatpush1.msra.mxu0 %v352
    %522 = vmatprep.subr.mxu0 %v349
    %523 = vmatpush1.msra.mxu0 %v348
    %524 = vmatprep.subr.mxu0 %v345
    %525 = vmatpush1.msra.mxu0 %v344
    %526 = vmatprep.subr.mxu0 %v341
    %527 = vmatpush1.msra.mxu0 %v340
    %528 = vmatprep.subr.mxu0 0.0
    %529 = vmatpush2.msra.mxu0 0.0
    %530 = vmatprep.subr.mxu0 0.0
    %531 = vmatpush2.msra.mxu0 0.0
    %532 = vmatprep.subr.mxu0 0.0
    %533 = vmatpush2.msra.mxu0 0.0
    %534 = vmatprep.subr.mxu0 0.0
    %535 = vmatpush2.msra.mxu0 0.0
    %536 = vmatprep.subr.mxu0 0.0
    %537 = vmatpush2.msra.mxu0 0.0
    %538 = vmatprep.subr.mxu0 0.0
    %539 = vmatpush2.msra.mxu0 0.0
    %540 = vmatprep.subr.mxu0 0.0
    %541 = vmatpush2.msra.mxu0 0.0
    %542 = vmatprep.subr.mxu0 0.0
    %543 = vmatpush2.msra.mxu0 0.0
    %544 = vmatprep.subr.mxu0 0.0
    %545 = vmatpush2.msra.mxu0 0.0
    %546 = vmatprep.subr.mxu0 0.0
    %547 = vmatpush2.msra.mxu0 0.0
    %548 = vmatprep.subr.mxu0 0.0
    %549 = vmatpush2.msra.mxu0 0.0
    %550 = vmatprep.subr.mxu0 0.0
    %551 = vmatpush2.msra.mxu0 0.0
    %552 = vmatprep.subr.mxu0 0.0
    %553 = vmatpush2.msra.mxu0 0.0
    %554 = vmatprep.subr.mxu0 0.0
    %555 = vmatpush2.msra.mxu0 0.0
    %556 = vmatprep.subr.mxu0 0.0
    %557 = vmatpush2.msra.mxu0 0.0
    %558 = vmatprep.subr.mxu0 0.0
    %559 = vmatpush2.msra.mxu0 0.0
    %560 = vmatprep.mubr.f32.mxu0 0.0
    %561 = vmatmul.mubr.f32.gmra.mxu0 %v337
    %v562 = vpop.f32.mrf.mxu0
    %v563 = vadd.f32 %v416, %v562
    %v564 = vpop.f32.mrf.mxu0
    %v565 = vadd.f32 %v420, %v564
    %566 = vdwg.mxu0
    %v567 = vtanh.pop %v492
    %v568 = vtanh.pop %v494
    %v569 = vtanh.pop %v563
    %v570 = vtanh.pop %v565
    %v571 = vld [vmem:[#allocation7] sm:$0xff]
    %v572 = vld [vmem:[#allocation7 + $0x8] sm:$0xff]
    %v573 = vld [vmem:[#allocation7 + $0x10] sm:$0xff]
    %v574 = vld [vmem:[#allocation7 + $0x18] sm:$0xff]
    %v575 = vld [vmem:[#allocation7 + $0x20] sm:$0xff]
    %v576 = vld [vmem:[#allocation7 + $0x28] sm:$0xff]
    %v577 = vld [vmem:[#allocation7 + $0x30] sm:$0xff]
    %v578 = vld [vmem:[#allocation7 + $0x38] sm:$0xff]
    %v579 = vld [vmem:[#allocation7 + $0x40] sm:$0xff]
    %v580 = vld [vmem:[#allocation7 + $0x48] sm:$0xff]
    %v581 = vld [vmem:[#allocation7 + $0x50] sm:$0xff]
    %v582 = vld [vmem:[#allocation7 + $0x58] sm:$0xff]
    %v583 = vld [vmem:[#allocation7 + $0x60] sm:$0xff]
    %v584 = vld [vmem:[#allocation7 + $0x68] sm:$0xff]
    %v585 = vld [vmem:[#allocation7 + $0x70] sm:$0xff]
    %v586 = vld [vmem:[#allocation7 + $0x78] sm:$0xff]
    %v587 = vld [vmem:[#allocation7 + $0x80] sm:$0xff]
    %v588 = vld [vmem:[#allocation7 + $0x88] sm:$0xff]
    %v589 = vld [vmem:[#allocation7 + $0x90] sm:$0xff]
    %v590 = vld [vmem:[#allocation7 + $0x98] sm:$0xff]
    %v591 = vld [vmem:[#allocation7 + $0xa0] sm:$0xff]
    %v592 = vld [vmem:[#allocation7 + $0xa8] sm:$0xff]
    %v593 = vld [vmem:[#allocation7 + $0xb0] sm:$0xff]
    %v594 = vld [vmem:[#allocation7 + $0xb8] sm:$0xff]
    %v595 = vld [vmem:[#allocation7 + $0xc0] sm:$0xff]
    %v596 = vld [vmem:[#allocation7 + $0xc8] sm:$0xff]
    %v597 = vld [vmem:[#allocation7 + $0xd0] sm:$0xff]
    %v598 = vld [vmem:[#allocation7 + $0xd8] sm:$0xff]
    %v599 = vld [vmem:[#allocation7 + $0xe0] sm:$0xff]
    %v600 = vld [vmem:[#allocation7 + $0xe8] sm:$0xff]
    %v601 = vld [vmem:[#allocation7 + $0xf0] sm:$0xff]
    %v602 = vld [vmem:[#allocation7 + $0xf8] sm:$0xff]
    %v603 = vld [vmem:[#allocation7 + $0x100] sm:$0xff]
    %v604 = vld [vmem:[#allocation7 + $0x108] sm:$0xff]
    %v605 = vld [vmem:[#allocation7 + $0x110] sm:$0xff]
    %v606 = vld [vmem:[#allocation7 + $0x118] sm:$0xff]
    %v607 = vld [vmem:[#allocation7 + $0x120] sm:$0xff]
    %v608 = vld [vmem:[#allocation7 + $0x128] sm:$0xff]
    %v609 = vld [vmem:[#allocation7 + $0x130] sm:$0xff]
    %v610 = vld [vmem:[#allocation7 + $0x138] sm:$0xff]
    %v611 = vld [vmem:[#allocation7 + $0x140] sm:$0xff]
    %v612 = vld [vmem:[#allocation7 + $0x148] sm:$0xff]
    %v613 = vld [vmem:[#allocation7 + $0x150] sm:$0xff]
    %v614 = vld [vmem:[#allocation7 + $0x158] sm:$0xff]
    %v615 = vld [vmem:[#allocation7 + $0x160] sm:$0xff]
    %v616 = vld [vmem:[#allocation7 + $0x168] sm:$0xff]
    %v617 = vld [vmem:[#allocation7 + $0x170] sm:$0xff]
    %v618 = vld [vmem:[#allocation7 + $0x178] sm:$0xff]
    %v619 = vld [vmem:[#allocation7 + $0x180] sm:$0xff]
    %v620 = vld [vmem:[#allocation7 + $0x188] sm:$0xff]
    %v621 = vld [vmem:[#allocation7 + $0x190] sm:$0xff]
    %v622 = vld [vmem:[#allocation7 + $0x198] sm:$0xff]
    %v623 = vld [vmem:[#allocation7 + $0x1a0] sm:$0xff]
    %v624 = vld [vmem:[#allocation7 + $0x1a8] sm:$0xff]
    %v625 = vld [vmem:[#allocation7 + $0x1b0] sm:$0xff]
    %v626 = vld [vmem:[#allocation7 + $0x1b8] sm:$0xff]
    %v627 = vld [vmem:[#allocation7 + $0x1c0] sm:$0xff]
    %v628 = vld [vmem:[#allocation7 + $0x1c8] sm:$0xff]
    %v629 = vld [vmem:[#allocation7 + $0x1d0] sm:$0xff]
    %v630 = vld [vmem:[#allocation7 + $0x1d8] sm:$0xff]
    %v631 = vld [vmem:[#allocation7 + $0x1e0] sm:$0xff]
    %v632 = vld [vmem:[#allocation7 + $0x1e8] sm:$0xff]
    %v633 = vld [vmem:[#allocation7 + $0x1f0] sm:$0xff]
    %v634 = vld [vmem:[#allocation7 + $0x1f8] sm:$0xff]
    %v635 = vld [vmem:[%s9 + $0x4] ss:$0 sm:$0xff]
    %636 = vmatprep.subr.mxu0 0.0
    %637 = vmatpush1.msra.mxu0 %v586
    %638 = vmatprep.subr.mxu0 0.0
    %639 = vmatpush1.msra.mxu0 %v585
    %640 = vmatprep.subr.mxu0 0.0
    %641 = vmatpush1.msra.mxu0 %v584
    %642 = vmatprep.subr.mxu0 0.0
    %643 = vmatpush1.msra.mxu0 %v583
    %644 = vmatprep.subr.mxu0 0.0
    %645 = vmatpush1.msra.mxu0 %v582
    %646 = vmatprep.subr.mxu0 0.0
    %647 = vmatpush1.msra.mxu0 %v581
    %648 = vmatprep.subr.mxu0 0.0
    %649 = vmatpush1.msra.mxu0 %v580
    %650 = vmatprep.subr.mxu0 0.0
    %651 = vmatpush1.msra.mxu0 %v579
    %652 = vmatprep.subr.mxu0 0.0
    %653 = vmatpush1.msra.mxu0 %v578
    %654 = vmatprep.subr.mxu0 0.0
    %655 = vmatpush1.msra.mxu0 %v577
    %656 = vmatprep.subr.mxu0 0.0
    %657 = vmatpush1.msra.mxu0 %v576
    %658 = vmatprep.subr.mxu0 0.0
    %659 = vmatpush1.msra.mxu0 %v575
    %660 = vmatprep.subr.mxu0 0.0
    %661 = vmatpush1.msra.mxu0 %v574
    %662 = vmatprep.subr.mxu0 0.0
    %663 = vmatpush1.msra.mxu0 %v573
    %664 = vmatprep.subr.mxu0 0.0
    %665 = vmatpush1.msra.mxu0 %v572
    %666 = vmatprep.subr.mxu0 0.0
    %667 = vmatpush1.msra.mxu0 %v571
    %668 = vmatprep.subr.mxu0 0.0
    %669 = vmatpush2.msra.mxu0 %v602
    %670 = vmatprep.subr.mxu0 0.0
    %671 = vmatpush2.msra.mxu0 %v601
    %672 = vmatprep.subr.mxu0 0.0
    %673 = vmatpush2.msra.mxu0 %v600
    %674 = vmatprep.subr.mxu0 0.0
    %675 = vmatpush2.msra.mxu0 %v599
    %676 = vmatprep.subr.mxu0 0.0
    %677 = vmatpush2.msra.mxu0 %v598
    %678 = vmatprep.subr.mxu0 0.0
    %679 = vmatpush2.msra.mxu0 %v597
    %680 = vmatprep.subr.mxu0 0.0
    %681 = vmatpush2.msra.mxu0 %v596
    %682 = vmatprep.subr.mxu0 0.0
    %683 = vmatpush2.msra.mxu0 %v595
    %684 = vmatprep.subr.mxu0 0.0
    %685 = vmatpush2.msra.mxu0 %v594
    %686 = vmatprep.subr.mxu0 0.0
    %687 = vmatpush2.msra.mxu0 %v593
    %688 = vmatprep.subr.mxu0 0.0
    %689 = vmatpush2.msra.mxu0 %v592
    %690 = vmatprep.subr.mxu0 0.0
    %691 = vmatpush2.msra.mxu0 %v591
    %692 = vmatprep.subr.mxu0 0.0
    %693 = vmatpush2.msra.mxu0 %v590
    %694 = vmatprep.subr.mxu0 0.0
    %695 = vmatpush2.msra.mxu0 %v589
    %696 = vmatprep.subr.mxu0 0.0
    %697 = vmatpush2.msra.mxu0 %v588
    %698 = vmatprep.subr.mxu0 0.0
    %699 = vmatpush2.msra.mxu0 %v587
    %700 = vmatprep.mubr.f32.mxu0 %v568
    %701 = vmatmul.mubr.f32.gmra.mxu0 %v567
    %v702 = vpop.f32.mrf.mxu0
    %v703 = vadd.f32 %v635, %v702
    %v704 = vpop.f32.mrf.mxu0
    %705 = vdwg.mxu0
    %706 = vmatprep.subr.mxu0 0.0
    %707 = vmatpush1.msra.mxu0 %v618
    %708 = vmatprep.subr.mxu0 0.0
    %709 = vmatpush1.msra.mxu0 %v617
    %710 = vmatprep.subr.mxu0 0.0
    %711 = vmatpush1.msra.mxu0 %v616
    %712 = vmatprep.subr.mxu0 0.0
    %713 = vmatpush1.msra.mxu0 %v615
    %714 = vmatprep.subr.mxu0 0.0
    %715 = vmatpush1.msra.mxu0 %v614
    %716 = vmatprep.subr.mxu0 0.0
    %717 = vmatpush1.msra.mxu0 %v613
    %718 = vmatprep.subr.mxu0 0.0
    %719 = vmatpush1.msra.mxu0 %v612
    %720 = vmatprep.subr.mxu0 0.0
    %721 = vmatpush1.msra.mxu0 %v611
    %722 = vmatprep.subr.mxu0 0.0
    %723 = vmatpush1.msra.mxu0 %v610
    %724 = vmatprep.subr.mxu0 0.0
    %725 = vmatpush1.msra.mxu0 %v609
    %726 = vmatprep.subr.mxu0 0.0
    %727 = vmatpush1.msra.mxu0 %v608
    %728 = vmatprep.subr.mxu0 0.0
    %729 = vmatpush1.msra.mxu0 %v607
    %730 = vmatprep.subr.mxu0 0.0
    %731 = vmatpush1.msra.mxu0 %v606
    %732 = vmatprep.subr.mxu0 0.0
    %733 = vmatpush1.msra.mxu0 %v605
    %734 = vmatprep.subr.mxu0 0.0
    %735 = vmatpush1.msra.mxu0 %v604
    %736 = vmatprep.subr.mxu0 0.0
    %737 = vmatpush1.msra.mxu0 %v603
    %738 = vmatprep.subr.mxu0 0.0
    %739 = vmatpush2.msra.mxu0 %v634
    %740 = vmatprep.subr.mxu0 0.0
    %741 = vmatpush2.msra.mxu0 %v633
    %742 = vmatprep.subr.mxu0 0.0
    %743 = vmatpush2.msra.mxu0 %v632
    %744 = vmatprep.subr.mxu0 0.0
    %745 = vmatpush2.msra.mxu0 %v631
    %746 = vmatprep.subr.mxu0 0.0
    %747 = vmatpush2.msra.mxu0 %v630
    %748 = vmatprep.subr.mxu0 0.0
    %749 = vmatpush2.msra.mxu0 %v629
    %750 = vmatprep.subr.mxu0 0.0
    %751 = vmatpush2.msra.mxu0 %v628
    %752 = vmatprep.subr.mxu0 0.0
    %753 = vmatpush2.msra.mxu0 %v627
    %754 = vmatprep.subr.mxu0 0.0
    %755 = vmatpush2.msra.mxu0 %v626
    %756 = vmatprep.subr.mxu0 0.0
    %757 = vmatpush2.msra.mxu0 %v625
    %758 = vmatprep.subr.mxu0 0.0
    %759 = vmatpush2.msra.mxu0 %v624
    %760 = vmatprep.subr.mxu0 0.0
    %761 = vmatpush2.msra.mxu0 %v623
    %762 = vmatprep.subr.mxu0 0.0
    %763 = vmatpush2.msra.mxu0 %v622
    %764 = vmatprep.subr.mxu0 0.0
    %765 = vmatpush2.msra.mxu0 %v621
    %766 = vmatprep.subr.mxu0 0.0
    %767 = vmatpush2.msra.mxu0 %v620
    %768 = vmatprep.subr.mxu0 0.0
    %769 = vmatpush2.msra.mxu0 %v619
    %770 = vmatprep.mubr.f32.mxu0 %v570
    %771 = vmatmul.mubr.f32.gmra.mxu0 %v569
    %v772 = vpop.f32.mrf.mxu0
    %v773 = vadd.f32 %v703, %v772
    %v774 = vpop.f32.mrf.mxu0
    %775 = vdwg.mxu0
    %v776 = vtanh.pop %v773
    %v777 = vld [vmem:[%s6] sm:$0xff]
    %v778 = vld [vmem:[%s6 + $0x8] sm:$0xff]
    %v779 = vld [vmem:[%s6 + $0x10] sm:$0xff]
    %v780 = vld [vmem:[%s6 + $0x18] sm:$0xff]
    %v781 = vld [vmem:[%s6 + $0x20] sm:$0xff]
    %v782 = vld [vmem:[%s6 + $0x28] sm:$0xff]
    %v783 = vld [vmem:[%s6 + $0x30] sm:$0xff]
    %v784 = vld [vmem:[%s6 + $0x38] sm:$0xff]
    %v785 = vld [vmem:[%s6 + $0x40] sm:$0xff]
    %v786 = vld [vmem:[%s6 + $0x48] sm:$0xff]
    %v787 = vld [vmem:[%s6 + $0x50] sm:$0xff]
    %v788 = vld [vmem:[%s6 + $0x58] sm:$0xff]
    %v789 = vld [vmem:[%s6 + $0x60] sm:$0xff]
    %v790 = vld [vmem:[%s6 + $0x68] sm:$0xff]
    %v791 = vld [vmem:[%s6 + $0x70] sm:$0xff]
    %v792 = vld [vmem:[%s6 + $0x78] sm:$0xff]
    %v793 = vld [vmem:[%s9 + $0x5] ss:$0 sm:$0xff]
    %794 = vmatprep.subr.mxu0 0.0
    %795 = vmatpush1.msra.mxu0 %v792
    %796 = vmatprep.subr.mxu0 0.0
    %797 = vmatpush1.msra.mxu0 %v791
    %798 = vmatprep.subr.mxu0 0.0
    %799 = vmatpush1.msra.mxu0 %v790
    %800 = vmatprep.subr.mxu0 0.0
    %801 = vmatpush1.msra.mxu0 %v789
    %802 = vmatprep.subr.mxu0 0.0
    %803 = vmatpush1.msra.mxu0 %v788
    %804 = vmatprep.subr.mxu0 0.0
    %805 = vmatpush1.msra.mxu0 %v787
    %806 = vmatprep.subr.mxu0 0.0
    %807 = vmatpush1.msra.mxu0 %v786
    %808 = vmatprep.subr.mxu0 0.0
    %809 = vmatpush1.msra.mxu0 %v785
    %810 = vmatprep.subr.mxu0 0.0
    %811 = vmatpush1.msra.mxu0 %v784
    %812 = vmatprep.subr.mxu0 0.0
    %813 = vmatpush1.msra.mxu0 %v783
    %814 = vmatprep.subr.mxu0 0.0
    %815 = vmatpush1.msra.mxu0 %v782
    %816 = vmatprep.subr.mxu0 0.0
    %817 = vmatpush1.msra.mxu0 %v781
    %818 = vmatprep.subr.mxu0 0.0
    %819 = vmatpush1.msra.mxu0 %v780
    %820 = vmatprep.subr.mxu0 0.0
    %821 = vmatpush1.msra.mxu0 %v779
    %822 = vmatprep.subr.mxu0 0.0
    %823 = vmatpush1.msra.mxu0 %v778
    %824 = vmatprep.subr.mxu0 0.0
    %825 = vmatpush1.msra.mxu0 %v777
    %826 = vmatprep.subr.mxu0 0.0
    %827 = vmatpush2.msra.mxu0 0.0
    %828 = vmatprep.subr.mxu0 0.0
    %829 = vmatpush2.msra.mxu0 0.0
    %830 = vmatprep.subr.mxu0 0.0
    %831 = vmatpush2.msra.mxu0 0.0
    %832 = vmatprep.subr.mxu0 0.0
    %833 = vmatpush2.msra.mxu0 0.0
    %834 = vmatprep.subr.mxu0 0.0
    %835 = vmatpush2.msra.mxu0 0.0
    %836 = vmatprep.subr.mxu0 0.0
    %837 = vmatpush2.msra.mxu0 0.0
    %838 = vmatprep.subr.mxu0 0.0
    %839 = vmatpush2.msra.mxu0 0.0
    %840 = vmatprep.subr.mxu0 0.0
    %841 = vmatpush2.msra.mxu0 0.0
    %842 = vmatprep.subr.mxu0 0.0
    %843 = vmatpush2.msra.mxu0 0.0
    %844 = vmatprep.subr.mxu0 0.0
    %845 = vmatpush2.msra.mxu0 0.0
    %846 = vmatprep.subr.mxu0 0.0
    %847 = vmatpush2.msra.mxu0 0.0
    %848 = vmatprep.subr.mxu0 0.0
    %849 = vmatpush2.msra.mxu0 0.0
    %850 = vmatprep.subr.mxu0 0.0
    %851 = vmatpush2.msra.mxu0 0.0
    %852 = vmatprep.subr.mxu0 0.0
    %853 = vmatpush2.msra.mxu0 0.0
    %854 = vmatprep.subr.mxu0 0.0
    %855 = vmatpush2.msra.mxu0 0.0
    %856 = vmatprep.subr.mxu0 0.0
    %857 = vmatpush2.msra.mxu0 0.0
    %858 = vmatprep.mubr.f32.mxu0 0.0
    %859 = vmatmul.mubr.f32.gmra.mxu0 %v776
    %v860 = vpop.f32.mrf.mxu0
    %v861 = vadd.f32 %v793, %v860
    %v862 = vpop.f32.mrf.mxu0
    %863 = vdwg.mxu0
    %v864 = vtanh.pop %v861
    %v865 = vld [vmem:[%s7] sm:$0xff]
    %v866 = vld [vmem:[%s7 + $0x8] sm:$0xff]
    %v867 = vld [vmem:[%s7 + $0x10] sm:$0xff]
    %v868 = vld [vmem:[%s7 + $0x18] sm:$0xff]
    %v869 = vld [vmem:[%s7 + $0x20] sm:$0xff]
    %v870 = vld [vmem:[%s7 + $0x28] sm:$0xff]
    %v871 = vld [vmem:[%s7 + $0x30] sm:$0xff]
    %v872 = vld [vmem:[%s7 + $0x38] sm:$0xff]
    %v873 = vld [vmem:[%s9 + $0x6] ss:$0 sm:$0xff]
    %v875 = vsel %vm263, %v864, 0
    %877 = vmatprep.subr.mxu0 0.0
    %878 = vmatpush1.msra.mxu0 0.0
    %879 = vmatprep.subr.mxu0 0.0
    %880 = vmatpush1.msra.mxu0 0.0
    %881 = vmatprep.subr.mxu0 0.0
    %882 = vmatpush1.msra.mxu0 0.0
    %883 = vmatprep.subr.mxu0 0.0
    %884 = vmatpush1.msra.mxu0 0.0
    %885 = vmatprep.subr.mxu0 0.0
    %886 = vmatpush1.msra.mxu0 0.0
    %887 = vmatprep.subr.mxu0 0.0
    %888 = vmatpush1.msra.mxu0 0.0
    %889 = vmatprep.subr.mxu0 0.0
    %890 = vmatpush1.msra.mxu0 0.0
    %891 = vmatprep.subr.mxu0 0.0
    %892 = vmatpush1.msra.mxu0 0.0
    %893 = vmatprep.subr.mxu0 0.0
    %894 = vmatpush1.msra.mxu0 %v872
    %895 = vmatprep.subr.mxu0 0.0
    %896 = vmatpush1.msra.mxu0 %v871
    %897 = vmatprep.subr.mxu0 0.0
    %898 = vmatpush1.msra.mxu0 %v870
    %899 = vmatprep.subr.mxu0 0.0
    %900 = vmatpush1.msra.mxu0 %v869
    %901 = vmatprep.subr.mxu0 0.0
    %902 = vmatpush1.msra.mxu0 %v868
    %903 = vmatprep.subr.mxu0 0.0
    %904 = vmatpush1.msra.mxu0 %v867
    %905 = vmatprep.subr.mxu0 0.0
    %906 = vmatpush1.msra.mxu0 %v866
    %907 = vmatprep.subr.mxu0 0.0
    %908 = vmatpush1.msra.mxu0 %v865
    %909 = vmatprep.subr.mxu0 0.0
    %910 = vmatpush2.msra.mxu0 0.0
    %911 = vmatprep.subr.mxu0 0.0
    %912 = vmatpush2.msra.mxu0 0.0
    %913 = vmatprep.subr.mxu0 0.0
    %914 = vmatpush2.msra.mxu0 0.0
    %915 = vmatprep.subr.mxu0 0.0
    %916 = vmatpush2.msra.mxu0 0.0
    %917 = vmatprep.subr.mxu0 0.0
    %918 = vmatpush2.msra.mxu0 0.0
    %919 = vmatprep.subr.mxu0 0.0
    %920 = vmatpush2.msra.mxu0 0.0
    %921 = vmatprep.subr.mxu0 0.0
    %922 = vmatpush2.msra.mxu0 0.0
    %923 = vmatprep.subr.mxu0 0.0
    %924 = vmatpush2.msra.mxu0 0.0
    %925 = vmatprep.subr.mxu0 0.0
    %926 = vmatpush2.msra.mxu0 0.0
    %927 = vmatprep.subr.mxu0 0.0
    %928 = vmatpush2.msra.mxu0 0.0
    %929 = vmatprep.subr.mxu0 0.0
    %930 = vmatpush2.msra.mxu0 0.0
    %931 = vmatprep.subr.mxu0 0.0
    %932 = vmatpush2.msra.mxu0 0.0
    %933 = vmatprep.subr.mxu0 0.0
    %934 = vmatpush2.msra.mxu0 0.0
    %935 = vmatprep.subr.mxu0 0.0
    %936 = vmatpush2.msra.mxu0 0.0
    %937 = vmatprep.subr.mxu0 0.0
    %938 = vmatpush2.msra.mxu0 0.0
    %939 = vmatprep.subr.mxu0 0.0
    %940 = vmatpush2.msra.mxu0 0.0
    %941 = vmatprep.mubr.f32.mxu0 0.0
    %942 = vmatmul.mubr.f32.gmra.mxu0 %v875
    %v943 = vpop.f32.mrf.mxu0
    %v944 = vadd.f32 %v873, %v943
    %v945 = vpop.f32.mrf.mxu0
    %946 = vdwg.mxu0
    %v947 = vtanh.pop %v944
    %v948 = vld [vmem:[%s8] sm:$0xff]
    %v949 = vld [vmem:[%s8 + $0x8] sm:$0xff]
    %v950 = vld [vmem:[%s8 + $0x10] sm:$0xff]
    %v951 = vld [vmem:[%s8 + $0x18] sm:$0xff]
    %v952 = vld [vmem:[%s9 + $0x7] ss:$0 sm:$0xff]
    %v954 = vsel %vm179, %v947, 0
    %956 = vmatprep.subr.mxu0 0.0
    %957 = vmatpush1.msra.mxu0 0.0
    %958 = vmatprep.subr.mxu0 0.0
    %959 = vmatpush1.msra.mxu0 0.0
    %960 = vmatprep.subr.mxu0 0.0
    %961 = vmatpush1.msra.mxu0 0.0
    %962 = vmatprep.subr.mxu0 0.0
    %963 = vmatpush1.msra.mxu0 0.0
    %964 = vmatprep.subr.mxu0 0.0
    %965 = vmatpush1.msra.mxu0 0.0
    %966 = vmatprep.subr.mxu0 0.0
    %967 = vmatpush1.msra.mxu0 0.0
    %968 = vmatprep.subr.mxu0 0.0
    %969 = vmatpush1.msra.mxu0 0.0
    %970 = vmatprep.subr.mxu0 0.0
    %971 = vmatpush1.msra.mxu0 0.0
    %972 = vmatprep.subr.mxu0 0.0
    %973 = vmatpush1.msra.mxu0 0.0
    %974 = vmatprep.subr.mxu0 0.0
    %975 = vmatpush1.msra.mxu0 0.0
    %976 = vmatprep.subr.mxu0 0.0
    %977 = vmatpush1.msra.mxu0 0.0
    %978 = vmatprep.subr.mxu0 0.0
    %979 = vmatpush1.msra.mxu0 0.0
    %980 = vmatprep.subr.mxu0 0.0
    %981 = vmatpush1.msra.mxu0 %v951
    %982 = vmatprep.subr.mxu0 0.0
    %983 = vmatpush1.msra.mxu0 %v950
    %984 = vmatprep.subr.mxu0 0.0
    %985 = vmatpush1.msra.mxu0 %v949
    %986 = vmatprep.subr.mxu0 0.0
    %987 = vmatpush1.msra.mxu0 %v948
    %988 = vmatprep.subr.mxu0 0.0
    %989 = vmatpush2.msra.mxu0 0.0
    %990 = vmatprep.subr.mxu0 0.0
    %991 = vmatpush2.msra.mxu0 0.0
    %992 = vmatprep.subr.mxu0 0.0
    %993 = vmatpush2.msra.mxu0 0.0
    %994 = vmatprep.subr.mxu0 0.0
    %995 = vmatpush2.msra.mxu0 0.0
    %996 = vmatprep.subr.mxu0 0.0
    %997 = vmatpush2.msra.mxu0 0.0
    %998 = vmatprep.subr.mxu0 0.0
    %999 = vmatpush2.msra.mxu0 0.0
    %1000 = vmatprep.subr.mxu0 0.0
    %1001 = vmatpush2.msra.mxu0 0.0
    %1002 = vmatprep.subr.mxu0 0.0
    %1003 = vmatpush2.msra.mxu0 0.0
    %1004 = vmatprep.subr.mxu0 0.0
    %1005 = vmatpush2.msra.mxu0 0.0
    %1006 = vmatprep.subr.mxu0 0.0
    %1007 = vmatpush2.msra.mxu0 0.0
    %1008 = vmatprep.subr.mxu0 0.0
    %1009 = vmatpush2.msra.mxu0 0.0
    %1010 = vmatprep.subr.mxu0 0.0
    %1011 = vmatpush2.msra.mxu0 0.0
    %1012 = vmatprep.subr.mxu0 0.0
    %1013 = vmatpush2.msra.mxu0 0.0
    %1014 = vmatprep.subr.mxu0 0.0
    %1015 = vmatpush2.msra.mxu0 0.0
    %1016 = vmatprep.subr.mxu0 0.0
    %1017 = vmatpush2.msra.mxu0 0.0
    %1018 = vmatprep.subr.mxu0 0.0
    %1019 = vmatpush2.msra.mxu0 0.0
    %1020 = vmatprep.mubr.f32.mxu0 0.0
    %1021 = vmatmul.mubr.f32.gmra.mxu0 %v954
    %v1022 = vpop.f32.mrf.mxu0
    %v1023 = vadd.f32 %v952, %v1022
    %v1024 = vpop.f32.mrf.mxu0
    %1025 = vdwg.mxu0
    %1026 = vst [vmem:[%s10] sm:$0xff] %v1023
    // Predicated region
    $region58: #{state_model_forward.1} parent=1 // pred_check
      _
    $region59: #{state_model_forward.1} parent=1 // pred_check_branch
      %1028 = sbr.rel (0) target = $region61
    $region60: #{state_model_forward.1} parent=1 // pred_region
      _
    $region61: #{state_model_forward.1} parent=1 // pred_fallthru
      _
    // Predicated region
    $region62: #{state_model_forward.1} parent=1 // pred_check
      _
    $region63: #{state_model_forward.1} parent=1 // pred_check_branch
      %1030 = sbr.rel (0) target = $region65
    $region64: #{state_model_forward.1} parent=1 // pred_region
      _
    $region65: #{state_model_forward.1} parent=1 // pred_fallthru
      _
    %1031 = vsyncpa [#allocation3], 1
    %1032 = vsyncpa [#allocation5], 1
    %1033 = vsyncpa [#allocation8], 1

</llo_original>
